<compile_context>
chip_gen: v5e
topology: v5e:2x2
jax: 0.10.0
libtpu: 0.0.40
codegen_flags: <defaults>
</compile_context>

<pallas_src>
import jax
import jax.numpy as jnp
from jax.experimental import pallas as pl
from jax.experimental.pallas import tpu as pltpu


def _round_up(x, m):
    return (x + m - 1) // m * m


def _se_kernel(x_ref, w1t_ref, b1_ref, w2t_ref, b2_ref, o_ref):
    """SE forward for one batch tile.

    x_ref / o_ref block: (TB, C, HW) -- HW on the lane axis, C on sublanes.
    w1t_ref: (C, Cr) with 1/HW folded in; w2t_ref: (Cr, C); biases are f32 rows.
    """
    # Global average pool: 1/HW is folded into w1, so this is a plain lane-axis
    # sum with an f32 accumulator, fed directly from the ref (no block-sized
    # temporary kept live across the matmul section).
    pooled = jnp.sum(x_ref[...], axis=-1, dtype=jnp.float32)          # (TB, C)

    # fc1 (1x1 conv) + ReLU on the MXU; weights in the input dtype, f32 accum.
    h = jnp.dot(pooled.astype(w1t_ref.dtype), w1t_ref[...],
                preferred_element_type=jnp.float32) + b1_ref[...]      # (TB, Cr)
    h = jnp.maximum(h, 0.0)

    # fc2 (1x1 conv) + sigmoid.
    s = jnp.dot(h.astype(w2t_ref.dtype), w2t_ref[...],
                preferred_element_type=jnp.float32) + b2_ref[...]      # (TB, C)
    s = jax.nn.sigmoid(s)

    # Scale: re-read the (VMEM-resident) input block, broadcast the per
    # (batch, channel) scale along the lane/spatial axis, store in input dtype.
    o_ref[...] = x_ref[...] * s.astype(o_ref.dtype)[:, :, None]


def _tpu_vmem_capacity_bytes():
    try:
        return int(pltpu.get_tpu_info().vmem_capacity_bytes)
    except Exception:
        return 64 * 1024 * 1024          # conservative (v7x-sized) fallback


def _plan_tiling(n, c, cr, hw, x_dtype, w_dtype):
    """Pick the batch tile TB and a VMEM limit.

    Targets: x blocks of ~2-8 MiB, >= ~8 grid steps when N allows (so each of
    2 TensorCores gets >= 3-4 steps of DMA/compute overlap), padding-aware
    VMEM accounting, generation-aware budget (v7x 64 MiB VMEM vs 128 MiB).
    """
    xb = jnp.dtype(x_dtype).itemsize
    wb = jnp.dtype(w_dtype).itemsize

    vmem_cap = _tpu_vmem_capacity_bytes()
    small_vmem = vmem_cap <= 64 * 1024 * 1024            # v7x-class part
    if small_vmem:
        vmem_ceiling = 40 * 1024 * 1024
        block_budget = 20 * 1024 * 1024                  # 4 * x-block <= this
        target_block = 4 * 1024 * 1024
    else:
        vmem_ceiling = 64 * 1024 * 1024
        block_budget = 32 * 1024 * 1024
        target_block = 8 * 1024 * 1024

    # Padded footprint of one batch element of the (TB, C, HW) x block.
    sub_x = max(8, 32 // xb)                             # sublane tile 8/16/32
    per_elem = _round_up(c, sub_x) * _round_up(hw, 128) * xb

    min_steps = 8                                        # >= 3-4 steps per TC
    cap_budget = max(1, block_budget // (4 * per_elem))
    cap_target = max(1, target_block // per_elem)
    cap_steps = max(1, n // min_steps) if n >= min_steps else 1
    tb = max(1, min(n, cap_budget, cap_target, cap_steps))

    # Padding-aware VMEM estimate: double-buffered in/out x blocks, double-
    # buffered weights/biases (constant index map), small f32 intermediates,
    # plus headroom for Mosaic internal scratch / deeper input buffering.
    sub_w = max(8, 32 // wb)
    x_block = tb * per_elem
    w_bytes = 2 * (_round_up(c, sub_w) * _round_up(cr, 128)
                   + _round_up(cr, sub_w) * _round_up(c, 128)) * wb
    b_bytes = 2 * (_round_up(cr, 128) + _round_up(c, 128)) * 8 * 4
    interm = _round_up(tb, 8) * (2 * _round_up(c, 128) + _round_up(cr, 128)) * 4
    vmem_limit = 4 * x_block + w_bytes + b_bytes + interm + (4 << 20)
    vmem_limit = int(min(vmem_ceiling, max(16 * 1024 * 1024, vmem_limit)))
    return tb, vmem_limit, small_vmem, x_block


def se_module(x_nchw, w1, b1, w2, b2):
    """SE forward.  x_nchw: (N, C, H, W); w1: (Cr, C); b1: (Cr,);
    w2: (C, Cr); b2: (C,).  Returns (N, C, H, W)."""
    N, C, H, W = x_nchw.shape
    Cr = w1.shape[0]
    HW = H * W

    # Free reshape (no data movement): spatial axis flattened onto lanes.
    x_flat = x_nchw.reshape(N, C, HW)

    # Fold 1/HW into fc1's weight, pre-transpose both weights to row-vector
    # matmul form, and keep them in the input dtype (f32 inputs keep exact
    # f32 weights; bf16 inputs get bf16 weights / native MXU path).
    w_dtype = x_nchw.dtype
    w1t = (w1.astype(jnp.float32) / float(HW)).T.astype(w_dtype)     # (C, Cr)
    w2t = w2.astype(jnp.float32).T.astype(w_dtype)                   # (Cr, C)
    b1r = b1.astype(jnp.float32).reshape(1, Cr)
    b2r = b2.astype(jnp.float32).reshape(1, C)

    TB, vmem_limit, small_vmem, x_block_bytes = _plan_tiling(
        N, C, Cr, HW, x_nchw.dtype, w_dtype)
    num_steps = pl.cdiv(N, TB)

    # On 128 MiB-VMEM parts (v5e/v6e) with small blocks and enough grid steps,
    # deepen the input pipeline to hide DMA issue latency (free headroom).
    x_spec_kwargs = {}
    if (not small_vmem) and x_block_bytes <= (2 << 20) and num_steps >= 6:
        x_spec_kwargs["pipeline_mode"] = pl.Buffered(3)
    x_in_spec = pl.BlockSpec((TB, C, HW), lambda i: (i, 0, 0), **x_spec_kwargs)

    out = pl.pallas_call(
        _se_kernel,
        out_shape=jax.ShapeDtypeStruct((N, C, HW), x_nchw.dtype),
        grid_spec=pltpu.PrefetchScalarGridSpec(
            num_scalar_prefetch=0,
            grid=(num_steps,),
            in_specs=[
                x_in_spec,                                    # x (N, C, HW)
                pl.BlockSpec((C, Cr), lambda i: (0, 0)),      # w1^T / HW
                pl.BlockSpec((1, Cr), lambda i: (0, 0)),      # b1 row
                pl.BlockSpec((Cr, C), lambda i: (0, 0)),      # w2^T
                pl.BlockSpec((1, C), lambda i: (0, 0)),       # b2 row
            ],
            out_specs=pl.BlockSpec((TB, C, HW), lambda i: (i, 0, 0)),
        ),
        compiler_params=pltpu.CompilerParams(
            dimension_semantics=("parallel",),
            vmem_limit_bytes=vmem_limit),
    )(x_flat, w1t, b1r, w2t, b2r)

    return out.reshape(N, C, H, W)


def se_module_ref(x, w1, b1, w2, b2):
    """Pure-JAX reference matching the PyTorch forward."""
    pooled = jnp.mean(x, axis=(2, 3))                     # (N, C)
    h = jnp.maximum(pooled @ w1.T + b1, 0.0)              # (N, Cr)
    s = jax.nn.sigmoid(h @ w2.T + b2)                     # (N, C)
    return x * s[:, :, None, None]


if __name__ == "__main__":
    key = jax.random.PRNGKey(0)
    N, C, H, W = 2, 4, 16, 16
    reduction = 2
    Cr = C // reduction

    kx, kw1, kb1, kw2, kb2 = jax.random.split(key, 5)
    x = jax.random.normal(kx, (N, C, H, W), dtype=jnp.float32)
    # Deterministic synthetic parameters (shapes per nn.Conv2d 1x1 weights).
    w1 = jax.random.normal(kw1, (Cr, C), dtype=jnp.float32) * 0.5
    b1 = jax.random.normal(kb1, (Cr,), dtype=jnp.float32) * 0.1
    w2 = jax.random.normal(kw2, (C, Cr), dtype=jnp.float32) * 0.5
    b2 = jax.random.normal(kb2, (C,), dtype=jnp.float32) * 0.1

    out = jax.block_until_ready(se_module(x, w1, b1, w2, b2))
    ref = se_module_ref(x, w1, b1, w2, b2)

    assert out.shape == (N, C, H, W)
    assert jnp.allclose(out, ref, atol=1e-5, rtol=1e-5), "mismatch vs reference"

    print("KERNEL_OK")
</pallas_src>

<mosaic_0001>
module attributes {stable_mosaic.version = 11 : i64} {
  func.func @_se_kernel(%arg0: i32, %arg1: memref<1x4x256xf32, #tpu.memory_space<vmem>>, %arg2: memref<4x2xf32, #tpu.memory_space<vmem>>, %arg3: memref<1x2xf32, #tpu.memory_space<vmem>>, %arg4: memref<2x4xf32, #tpu.memory_space<vmem>>, %arg5: memref<1x4xf32, #tpu.memory_space<vmem>>, %arg6: memref<1x4x256xf32, #tpu.memory_space<vmem>>) attributes {dimension_semantics = [#tpu.dimension_semantics<parallel>], iteration_bounds = array<i64: 2>, scalar_prefetch = 0 : i64, scratch_operands = 0 : i64, tpu.core_type = #tpu.core_type<tc>, window_params = [{transform_indices = @transform_0, window_bounds = array<i64: 1, 4, 256>}, {pipeline_mode = #tpu.pipeline_mode<synchronous>, transform_indices = @transform_1, window_bounds = array<i64: 4, 2>}, {pipeline_mode = #tpu.pipeline_mode<synchronous>, transform_indices = @transform_2, window_bounds = array<i64: 1, 2>}, {pipeline_mode = #tpu.pipeline_mode<synchronous>, transform_indices = @transform_3, window_bounds = array<i64: 2, 4>}, {pipeline_mode = #tpu.pipeline_mode<synchronous>, transform_indices = @transform_4, window_bounds = array<i64: 1, 4>}, {transform_indices = @transform_5, window_bounds = array<i64: 1, 4, 256>}]} {
    %c0 = arith.constant 0 : index
    %c0_0 = arith.constant 0 : index
    %c0_1 = arith.constant 0 : index
    %0 = vector.load %arg1[%c0, %c0_0, %c0_1] : memref<1x4x256xf32, #tpu.memory_space<vmem>>, vector<1x4x256xf32>
    %cst = arith.constant dense<0.000000e+00> : vector<1x4xf32>
    %1 = vector.multi_reduction <add>, %0, %cst [2] : vector<1x4x256xf32> to vector<1x4xf32>
    %c0_2 = arith.constant 0 : index
    %c0_3 = arith.constant 0 : index
    %2 = vector.load %arg2[%c0_2, %c0_3] : memref<4x2xf32, #tpu.memory_space<vmem>>, vector<4x2xf32>
    %cst_4 = arith.constant dense<0.000000e+00> : vector<1x2xf32>
    %3 = tpu.matmul %1, %2, %cst_4 {dimension_numbers = #tpu.dot_dimension_numbers<[1], [0], [0], [1], [0, 0, 1, 1], [], []>} : vector<1x4xf32>, vector<4x2xf32>, vector<1x2xf32> -> vector<1x2xf32>
    %c0_5 = arith.constant 0 : index
    %c0_6 = arith.constant 0 : index
    %4 = vector.load %arg3[%c0_5, %c0_6] : memref<1x2xf32, #tpu.memory_space<vmem>>, vector<1x2xf32>
    %5 = arith.addf %3, %4 : vector<1x2xf32>
    %cst_7 = arith.constant 0.000000e+00 : f32
    %6 = vector.broadcast %cst_7 : f32 to vector<1x2xf32>
    %7 = arith.maximumf %5, %6 : vector<1x2xf32>
    %c0_8 = arith.constant 0 : index
    %c0_9 = arith.constant 0 : index
    %8 = vector.load %arg4[%c0_8, %c0_9] : memref<2x4xf32, #tpu.memory_space<vmem>>, vector<2x4xf32>
    %cst_10 = arith.constant dense<0.000000e+00> : vector<1x4xf32>
    %9 = tpu.matmul %7, %8, %cst_10 {dimension_numbers = #tpu.dot_dimension_numbers<[1], [0], [0], [1], [0, 0, 1, 1], [], []>} : vector<1x2xf32>, vector<2x4xf32>, vector<1x4xf32> -> vector<1x4xf32>
    %c0_11 = arith.constant 0 : index
    %c0_12 = arith.constant 0 : index
    %10 = vector.load %arg5[%c0_11, %c0_12] : memref<1x4xf32, #tpu.memory_space<vmem>>, vector<1x4xf32>
    %11 = arith.addf %9, %10 : vector<1x4xf32>
    %12 = arith.negf %11 : vector<1x4xf32>
    %13 = math.exp %12 : vector<1x4xf32>
    %cst_13 = arith.constant 1.000000e+00 : f32
    %14 = vector.broadcast %cst_13 : f32 to vector<1x4xf32>
    %15 = arith.addf %14, %13 : vector<1x4xf32>
    %16 = arith.divf %14, %15 : vector<1x4xf32>
    %c0_14 = arith.constant 0 : index
    %c0_15 = arith.constant 0 : index
    %c0_16 = arith.constant 0 : index
    %17 = vector.load %arg1[%c0_14, %c0_15, %c0_16] : memref<1x4x256xf32, #tpu.memory_space<vmem>>, vector<1x4x256xf32>
    %18 = vector.shape_cast %16 : vector<1x4xf32> to vector<1x4x1xf32>
    %19 = vector.broadcast %18 : vector<1x4x1xf32> to vector<1x4x256xf32>
    %20 = arith.mulf %17, %19 : vector<1x4x256xf32>
    %c0_17 = arith.constant 0 : index
    %c0_18 = arith.constant 0 : index
    %c0_19 = arith.constant 0 : index
    %21 = vector.load %arg6[%c0_17, %c0_18, %c0_19] : memref<1x4x256xf32, #tpu.memory_space<vmem>>, vector<1x4x256xf32>
    tpu.vector_store %arg6[%c0_17, %c0_18, %c0_19], %20 {strides = array<i32>} : memref<1x4x256xf32, #tpu.memory_space<vmem>>, vector<1x4x256xf32>,
    return
  }
  func.func @transform_0(%arg0: i32) -> (i32, i32, i32) {
    %c0_i32 = arith.constant 0 : i32
    %c0_i32_0 = arith.constant 0 : i32
    %c0_i32_1 = arith.constant 0 : i32
    return %arg0, %c0_i32, %c0_i32_0 : i32, i32, i32
  }
  func.func @transform_1(%arg0: i32) -> (i32, i32) {
    %c0_i32 = arith.constant 0 : i32
    %c0_i32_0 = arith.constant 0 : i32
    %c0_i32_1 = arith.constant 0 : i32
    return %c0_i32, %c0_i32_0 : i32, i32
  }
  func.func @transform_2(%arg0: i32) -> (i32, i32) {
    %c0_i32 = arith.constant 0 : i32
    %c0_i32_0 = arith.constant 0 : i32
    %c0_i32_1 = arith.constant 0 : i32
    return %c0_i32, %c0_i32_0 : i32, i32
  }
  func.func @transform_3(%arg0: i32) -> (i32, i32) {
    %c0_i32 = arith.constant 0 : i32
    %c0_i32_0 = arith.constant 0 : i32
    %c0_i32_1 = arith.constant 0 : i32
    return %c0_i32, %c0_i32_0 : i32, i32
  }
  func.func @transform_4(%arg0: i32) -> (i32, i32) {
    %c0_i32 = arith.constant 0 : i32
    %c0_i32_0 = arith.constant 0 : i32
    %c0_i32_1 = arith.constant 0 : i32
    return %c0_i32, %c0_i32_0 : i32, i32
  }
  func.func @transform_5(%arg0: i32) -> (i32, i32, i32) {
    %c0_i32 = arith.constant 0 : i32
    %c0_i32_0 = arith.constant 0 : i32
    %c0_i32_1 = arith.constant 0 : i32
    return %arg0, %c0_i32, %c0_i32_0 : i32, i32, i32
  }
}

</mosaic_0001>

<llo_original>
// kernel: tpu_custom_call.1
$region0: #{tpu_custom_call.1}
  #allocation0 [shape = 'u32[]', space=smem, size = 0x4, offset = 0x4, fixed_abs, tag = 'smem constant byte address 0x4 - core index']
  #allocation1 [shape = 'u32[72,128]{1,0:T(1,128)}', space=vmem, size = 0x9000, scoped, tag = 'internal scratch']
  %s0 = inlined_call_operand.hbm [shape: f32[2,4,256], index: 0, kind: input, shape index: {}]
  %s1 = inlined_call_operand.vmem [shape: f32[4,2], index: 1, kind: input, shape index: {}]
  %s2 = inlined_call_operand.vmem [shape: f32[1,2], index: 2, kind: input, shape index: {}]
  %s3 = inlined_call_operand.vmem [shape: f32[2,4], index: 3, kind: input, shape index: {}]
  %s4 = inlined_call_operand.vmem [shape: f32[1,4], index: 4, kind: input, shape index: {}]
  %s5 = inlined_call_operand.hbm [shape: f32[2,4,256], index: 5, kind: output, shape index: {}]
  %s6 = sld [smem:[#allocation0]]
  $region57: #{tpu_custom_call.1} parent=0
    _
  %s8 = ssub.s32 1, %s6
  %s9 = scalar_select 0, %s8, %s6
  $region1: #{tpu_custom_call.1} parent=0
    #allocation2 [shape = 'u8[8192]{0}', space=vmem, size = 0x2000, scoped, tag = 'input window, operand 0']
    #allocation3 [shape = 's32[2]{0}', space=sflag, size = 0x8, scoped, tag = 'scoped memory for tpu_custom_call.1']
    #allocation4 [shape = 's32[2]{0}', space=sflag, size = 0x8, scoped, tag = 'scoped memory for tpu_custom_call.1']
    #allocation5 [shape = 'u8[8192]{0}', space=vmem, size = 0x2000, scoped, tag = 'output window, operand 0']
    %10 = vsyncpa [#allocation3], 0
    %s11 = scalar_lea.sflag [#allocation3], 1
    %12 = vsyncpa %s11, 0
    %13 = vsyncpa [#allocation4], 0
    %s14 = scalar_lea.sflag [#allocation4], 1
    %15 = vsyncpa %s14, 0
    loop: start=0, step=1, limit=4
    $region2: #{tpu_custom_call.1} parent=1 // loop_pre_header
      _
    $region3: #{tpu_custom_call.1} parent=1 // loop_header
      %s17 = sphi 0, %s21
      %p18 = scmp.ge.s32.totalorder %s17, 4
      %s27 = sphi 0, %s29
      %s30 = sphi 0, %s27
      %s31 = sphi 0, %s30
      %s47 = sphi 0, %s31
      %s51 = sphi 0, %s51
      %s53 = sphi 0, %s51
      %s54 = sphi 0, %s53
      %s68 = sphi 0, %s54
      %s72 = sphi 0, %s72
      %s74 = sphi 0, %s72
      %s75 = sphi 0, %s74
      %s89 = sphi 0, %s75
      %s93 = sphi 0, %s93
      %s95 = sphi 0, %s93
      %s96 = sphi 0, %s95
      %s110 = sphi 0, %s96
      %s114 = sphi 0, %s114
      %s116 = sphi 0, %s114
      %s117 = sphi 0, %s116
      %s131 = sphi 0, %s117
      %s137 = sphi 0, %s139
      %s140 = sphi 0, %s137
      %s141 = sphi 0, %s140
      %s157 = sphi 0, %s141
    $region4: #{tpu_custom_call.1} parent=1 // loop_header_branch
      %20 = sbr.rel (%p18) target = $region8
    $region5: #{tpu_custom_call.1} parent=1 // loop_body
      %s22 = ssub.s32 %s17, 1
      %s23 = ssub.s32 %s17, 2
      %s24 = sadd.s32 %s17, 1
      %s25 = ssub.s32 %s17, %s24
      %p26 = scmp.eq.s32.totalorder %s25, 0
      %s28 = sadd.s32 %s27, 1
      %s29 = scalar_select %p26, %s27, %s28
      %p32 = pneg %p26
      %p33 = scmp.eq.s32.totalorder %s17, 1
      %p34 = por %p32, %p33
      %p35 = scmp.ne.s32.totalorder %s27, %s30
      %p36 = scmp.eq.s32.totalorder %s17, 0
      %p37 = por %p35, %p36
      %p38 = scmp.ne.s32.totalorder %s27, %s30
      %p39 = scmp.eq.s32.totalorder %s22, 1
      %p40 = por %p38, %p39
      %p41 = scmp.ne.s32.totalorder %s30, %s31
      %p42 = scmp.eq.s32.totalorder %s22, 0
      %p43 = por %p41, %p42
      %p44 = scmp.ne.s32.totalorder %s30, %s31
      %p45 = scmp.eq.s32.totalorder %s23, 1
      %p46 = por %p44, %p45
      %p48 = scmp.ne.s32.totalorder %s31, %s47
      %p49 = scmp.eq.s32.totalorder %s23, 0
      %p50 = por %p48, %p49
      %s52 = sadd.s32 %s51, 1
      %p55 = scmp.eq.s32.totalorder %s17, 1
      %p56 = scmp.ne.s32.totalorder %s51, %s53
      %p57 = scmp.eq.s32.totalorder %s17, 0
      %p58 = por %p56, %p57
      %p59 = scmp.ne.s32.totalorder %s51, %s53
      %p60 = scmp.eq.s32.totalorder %s22, 1
      %p61 = por %p59, %p60
      %p62 = scmp.ne.s32.totalorder %s53, %s54
      %p63 = scmp.eq.s32.totalorder %s22, 0
      %p64 = por %p62, %p63
      %p65 = scmp.ne.s32.totalorder %s53, %s54
      %p66 = scmp.eq.s32.totalorder %s23, 1
      %p67 = por %p65, %p66
      %p69 = scmp.ne.s32.totalorder %s54, %s68
      %p70 = scmp.eq.s32.totalorder %s23, 0
      %p71 = por %p69, %p70
      %s73 = sadd.s32 %s72, 1
      %p76 = scmp.eq.s32.totalorder %s17, 1
      %p77 = scmp.ne.s32.totalorder %s72, %s74
      %p78 = scmp.eq.s32.totalorder %s17, 0
      %p79 = por %p77, %p78
      %p80 = scmp.ne.s32.totalorder %s72, %s74
      %p81 = scmp.eq.s32.totalorder %s22, 1
      %p82 = por %p80, %p81
      %p83 = scmp.ne.s32.totalorder %s74, %s75
      %p84 = scmp.eq.s32.totalorder %s22, 0
      %p85 = por %p83, %p84
      %p86 = scmp.ne.s32.totalorder %s74, %s75
      %p87 = scmp.eq.s32.totalorder %s23, 1
      %p88 = por %p86, %p87
      %p90 = scmp.ne.s32.totalorder %s75, %s89
      %p91 = scmp.eq.s32.totalorder %s23, 0
      %p92 = por %p90, %p91
      %s94 = sadd.s32 %s93, 1
      %p97 = scmp.eq.s32.totalorder %s17, 1
      %p98 = scmp.ne.s32.totalorder %s93, %s95
      %p99 = scmp.eq.s32.totalorder %s17, 0
      %p100 = por %p98, %p99
      %p101 = scmp.ne.s32.totalorder %s93, %s95
      %p102 = scmp.eq.s32.totalorder %s22, 1
      %p103 = por %p101, %p102
      %p104 = scmp.ne.s32.totalorder %s95, %s96
      %p105 = scmp.eq.s32.totalorder %s22, 0
      %p106 = por %p104, %p105
      %p107 = scmp.ne.s32.totalorder %s95, %s96
      %p108 = scmp.eq.s32.totalorder %s23, 1
      %p109 = por %p107, %p108
      %p111 = scmp.ne.s32.totalorder %s96, %s110
      %p112 = scmp.eq.s32.totalorder %s23, 0
      %p113 = por %p111, %p112
      %s115 = sadd.s32 %s114, 1
      %p118 = scmp.eq.s32.totalorder %s17, 1
      %p119 = scmp.ne.s32.totalorder %s114, %s116
      %p120 = scmp.eq.s32.totalorder %s17, 0
      %p121 = por %p119, %p120
      %p122 = scmp.ne.s32.totalorder %s114, %s116
      %p123 = scmp.eq.s32.totalorder %s22, 1
      %p124 = por %p122, %p123
      %p125 = scmp.ne.s32.totalorder %s116, %s117
      %p126 = scmp.eq.s32.totalorder %s22, 0
      %p127 = por %p125, %p126
      %p128 = scmp.ne.s32.totalorder %s116, %s117
      %p129 = scmp.eq.s32.totalorder %s23, 1
      %p130 = por %p128, %p129
      %p132 = scmp.ne.s32.totalorder %s117, %s131
      %p133 = scmp.eq.s32.totalorder %s23, 0
      %p134 = por %p132, %p133
      %s135 = ssub.s32 %s17, %s24
      %p136 = scmp.eq.s32.totalorder %s135, 0
      %s138 = sadd.s32 %s137, 1
      %s139 = scalar_select %p136, %s137, %s138
      %p142 = pneg %p136
      %p143 = scmp.eq.s32.totalorder %s17, 1
      %p144 = por %p142, %p143
      %p145 = scmp.ne.s32.totalorder %s137, %s140
      %p146 = scmp.eq.s32.totalorder %s17, 0
      %p147 = por %p145, %p146
      %p148 = scmp.ne.s32.totalorder %s137, %s140
      %p149 = scmp.eq.s32.totalorder %s22, 1
      %p150 = por %p148, %p149
      %p151 = scmp.ne.s32.totalorder %s140, %s141
      %p152 = scmp.eq.s32.totalorder %s22, 0
      %p153 = por %p151, %p152
      %p154 = scmp.ne.s32.totalorder %s140, %s141
      %p155 = scmp.eq.s32.totalorder %s23, 1
      %p156 = por %p154, %p155
      %p158 = scmp.ne.s32.totalorder %s141, %s157
      %p159 = scmp.eq.s32.totalorder %s23, 0
      %p160 = por %p158, %p159
      %p161 = scmp.le.s32.totalorder 1, %s17
      %p162 = scmp.lt.s32.totalorder %s17, 3
      %p163 = pnand %p161, %p162
      %p164 = pneg %p163
      // Predicated region
      $region9: #{tpu_custom_call.1} parent=5 // pred_check
        _
      $region10: #{tpu_custom_call.1} parent=5 // pred_check_branch
        %166 = sbr.rel (%p163) target = $region12
      $region11: #{tpu_custom_call.1} parent=5 // pred_region
        %s167 = ssub.s32 %s17, 1
        // Predicated region
        $region13: #{tpu_custom_call.1} parent=11 // pred_check
          %p168 = pneg %p64
        $region14: #{tpu_custom_call.1} parent=11 // pred_check_branch
          %170 = sbr.rel (%p168) target = $region16
        $region15: #{tpu_custom_call.1} parent=11 // pred_region
          _
        $region16: #{tpu_custom_call.1} parent=11 // pred_fallthru
          _
        // Predicated region
        $region17: #{tpu_custom_call.1} parent=11 // pred_check
          %p171 = pneg %p85
        $region18: #{tpu_custom_call.1} parent=11 // pred_check_branch
          %173 = sbr.rel (%p171) target = $region20
        $region19: #{tpu_custom_call.1} parent=11 // pred_region
          _
        $region20: #{tpu_custom_call.1} parent=11 // pred_fallthru
          _
        // Predicated region
        $region21: #{tpu_custom_call.1} parent=11 // pred_check
          %p174 = pneg %p106
        $region22: #{tpu_custom_call.1} parent=11 // pred_check_branch
          %176 = sbr.rel (%p174) target = $region24
        $region23: #{tpu_custom_call.1} parent=11 // pred_region
          _
        $region24: #{tpu_custom_call.1} parent=11 // pred_fallthru
          _
        // Predicated region
        $region25: #{tpu_custom_call.1} parent=11 // pred_check
          %p177 = pneg %p127
        $region26: #{tpu_custom_call.1} parent=11 // pred_check_branch
          %179 = sbr.rel (%p177) target = $region28
        $region27: #{tpu_custom_call.1} parent=11 // pred_region
          _
        $region28: #{tpu_custom_call.1} parent=11 // pred_fallthru
          _
      $region12: #{tpu_custom_call.1} parent=5 // pred_fallthru
        _
      %p180 = scmp.lt.s32.totalorder %s17, 2
      // Predicated region
      $region29: #{tpu_custom_call.1} parent=5 // pred_check
        %p181 = pneg %p180
      $region30: #{tpu_custom_call.1} parent=5 // pred_check_branch
        %183 = sbr.rel (%p181) target = $region32
      $region31: #{tpu_custom_call.1} parent=5 // pred_region
        // Predicated region
        $region33: #{tpu_custom_call.1} parent=31 // pred_check
          %p184 = pneg %p37
        $region34: #{tpu_custom_call.1} parent=31 // pred_check_branch
          %186 = sbr.rel (%p184) target = $region36
        $region35: #{tpu_custom_call.1} parent=31 // pred_region
          %s187 = sand.u32 %s27, 1
          %s188 = scalar_lea.sflag [#allocation3], %s187
          %s189 = sand.u32 %s27, 1
          %s190 = smul.addr %s189, 8
          %s191 = scalar_lea.vmem [#allocation2], %s190
          %193 = vsyncadd %s188, 0
          %s194 = smul.addr %s17, 2
          %s195 = smul.addr %s194, 4
          %s196 = scalar_lea.hbm %s0, %s195
          %s198 = sshll.u32 %s196, 4
          %s199 = int_to_ptr.hbm [resolvable:$true] %s198
          %s200 = sshll.u32 %s191, 4
          %s201 = int_to_ptr.vmem [resolvable:$true] %s200
          %203 = dma.hbm_to_vmem [thread:$0]  %s199, 128, %s201, %s188
        $region36: #{tpu_custom_call.1} parent=31 // pred_fallthru
          _
      $region32: #{tpu_custom_call.1} parent=5 // pred_fallthru
        _
      %p204 = scmp.le.s32.totalorder 1, %s17
      %p205 = scmp.lt.s32.totalorder %s17, 3
      %p206 = pnand %p204, %p205
      %p207 = pneg %p206
      // Predicated region
      $region37: #{tpu_custom_call.1} parent=5 // pred_check
        _
      $region38: #{tpu_custom_call.1} parent=5 // pred_check_branch
        %209 = sbr.rel (%p206) target = $region40
      $region39: #{tpu_custom_call.1} parent=5 // pred_region
        %s210 = ssub.s32 %s17, 1
        %s211 = sand.u32 %s30, 1
        %s212 = scalar_lea.sflag [#allocation3], %s211
        %s213 = sand.u32 %s30, 1
        %s214 = smul.addr %s213, 8
        %s215 = scalar_lea.vmem [#allocation2], %s214
        // Predicated region
        $region41: #{tpu_custom_call.1} parent=39 // pred_check
          %p216 = pneg %p43
        $region42: #{tpu_custom_call.1} parent=39 // pred_check_branch
          %218 = sbr.rel (%p216) target = $region44
        $region43: #{tpu_custom_call.1} parent=39 // pred_region
          %220 = dma.done %s212, 128
        $region44: #{tpu_custom_call.1} parent=39 // pred_fallthru
          _
        %s221 = sand.u32 %s30, 1
        %s222 = scalar_lea.sflag [#allocation3], %s221
        %s223 = sand.u32 %s30, 1
        %s224 = smul.addr %s223, 8
        %s225 = scalar_lea.vmem [#allocation2], %s224
        %p226 = pneg %p43
        %p227 = pneg %p40
        %p228 = pneg %p64
        %p229 = pneg %p61
        %p230 = pneg %p85
        %p231 = pneg %p82
        %p232 = pneg %p106
        %p233 = pneg %p103
        %p234 = pneg %p127
        %p235 = pneg %p124
        %p236 = pneg %p153
        %p237 = pneg %p150
        %s238 = sand.u32 %s140, 1
        %s239 = scalar_lea.sflag [#allocation4], %s238
        %s240 = sand.u32 %s140, 1
        %s241 = smul.addr %s240, 8
        %s242 = scalar_lea.vmem [#allocation5], %s241
        %v243 = vld [vmem:[%s215] sm:$0xff]
        %245 = vst [vmem:[#allocation1] ss:$2 sm:$0xff] %v243
        %v246 = vld.sshfl [vmem:[#allocation1] sm:$0xff pattern:$0x75316420]
        %v247 = vld.sshfl [vmem:[#allocation1 + $0x8] sm:$0xff pattern:$0x75316420]
        %vm250 = vcmask 1043456
        %v251 = vsel %vm250, %v246, 0.0
        %v252 = vsel %vm250, %v247, 0.0
        %v253 = vadd.f32 %v251, %v252
        %254 = vadd.xlane.f32.xlu0 %v253
        %v255 = vpop.xlane.xlu0 %254
        %v256 = vld [vmem:[%s1] sm:$0xf]
        %v257 = vld [vmem:[%s2] sm:$0x1]
        %v259 = vlaneseq
        %v260 = vand.u32 %v259, 127
        %v261 = vperm.slane %v255, %v260
        %vm262 = vcmask 31744
        %v263 = vsel %vm262, %v261, 0
        %v266 = vsel %vm250, %v256, 0
        %268 = vmatpush.msra.mxu0 0.0
        %269 = vmatpush.msra.mxu0 0.0
        %270 = vmatpush.msra.mxu0 0.0
        %271 = vmatpush.msra.mxu0 0.0
        %272 = vmatpush.msra.mxu0 0.0
        %273 = vmatpush.msra.mxu0 0.0
        %274 = vmatpush.msra.mxu0 0.0
        %275 = vmatpush.msra.mxu0 0.0
        %276 = vmatpush.msra.mxu0 0.0
        %277 = vmatpush.msra.mxu0 0.0
        %278 = vmatpush.msra.mxu0 0.0
        %279 = vmatpush.msra.mxu0 0.0
        %280 = vmatpush.msra.mxu0 0.0
        %281 = vmatpush.msra.mxu0 0.0
        %282 = vmatpush.msra.mxu0 0.0
        %283 = vmatpush.msra.mxu0 %v266
        %284 = vmatmul.f32.gmra.mxu0 %v263
        %v285 = vpop.f32.mrf.mxu0
        %v286 = vadd.f32 %v257, %v285
        %287 = vdwg.mxu0
        %v288 = vmax.f32 %v286, 0.0
        %v289 = vld [vmem:[%s3] sm:$0x3]
        %v290 = vld [vmem:[%s4] sm:$0x1]
        %vm291 = vcmask 15360
        %v293 = vsel %vm291, %v288, 0
        %vm295 = vcmask 1041408
        %v297 = vsel %vm295, %v289, 0
        %299 = vmatpush.msra.mxu0 0.0
        %300 = vmatpush.msra.mxu0 0.0
        %301 = vmatpush.msra.mxu0 0.0
        %302 = vmatpush.msra.mxu0 0.0
        %303 = vmatpush.msra.mxu0 0.0
        %304 = vmatpush.msra.mxu0 0.0
        %305 = vmatpush.msra.mxu0 0.0
        %306 = vmatpush.msra.mxu0 0.0
        %307 = vmatpush.msra.mxu0 0.0
        %308 = vmatpush.msra.mxu0 0.0
        %309 = vmatpush.msra.mxu0 0.0
        %310 = vmatpush.msra.mxu0 0.0
        %311 = vmatpush.msra.mxu0 0.0
        %312 = vmatpush.msra.mxu0 0.0
        %313 = vmatpush.msra.mxu0 0.0
        %314 = vmatpush.msra.mxu0 %v297
        %315 = vmatmul.f32.gmra.mxu0 %v293
        %v316 = vpop.f32.mrf.mxu0
        %v317 = vadd.f32 %v290, %v316
        %318 = vdwg.mxu0
        %v319 = vxor.u32 %v317, 2147483648
        %v320 = vmul.f32 %v319, 1.442695
        %v321 = vpow.pop %v320
        %v322 = vadd.f32 %v321, 1.0
        %v323 = vrcp.pop %v322
        %v324 = vmul.f32 %v322, %v323
        %v325 = vsub.f32 1.0, %v324
        %v326 = vmul.f32 %v323, %v325
        %v327 = vadd.f32 %v323, %v326
        %vm328 = vweird.f32 %v322
        %vm329 = vweird.f32 %v323
        %vm330 = vmor %vm328, %vm329
        %v331 = vsel %vm330, %v323, %v327
        %v332 = vand.u32 2147483647, %v322
        %vm333 = vcmp.eq.f32.partialorder %v332, 8.507059e+37
        %v334 = vand.u32 %v322, 2147483648
        %v335 = vor.u32 1.1754944e-38, %v334
        %v336 = vsel %vm333, %v335, %v331
        %v337 = vmul.f32 1.0, %v336
        %v338 = vperm.slane %v337, 0
        %v339 = vlaneseq
        %v340 = vshrl.u32 %v339, 7
        %342 = vset.pattern.permute.xlu0 %v340
        %343 = vperm.xlu0 %342, %v338
        %v344 = vpop.permute.xlu0 %343
        %v347 = vunpack.c.l.s4 839922192
        %v348 = vunpack.c.0.s8 %v347
        %v349 = vperm.slane %v344, %v348
        %v351 = vmul.f32 %v243, %v349
        %352 = vst [vmem:[%s242] sm:$0xff] %v351
        %s353 = sand.u32 %s140, 1
        %s354 = scalar_lea.sflag [#allocation4], %s353
        %s355 = sand.u32 %s140, 1
        %s356 = smul.addr %s355, 8
        %s357 = scalar_lea.vmem [#allocation5], %s356
        // Predicated region
        $region45: #{tpu_custom_call.1} parent=39 // pred_check
          %p358 = pneg %p150
        $region46: #{tpu_custom_call.1} parent=39 // pred_check_branch
          %360 = sbr.rel (%p358) target = $region48
        $region47: #{tpu_custom_call.1} parent=39 // pred_region
          %362 = vsyncadd %s354, 0
          %s363 = smul.addr %s22, 2
          %s364 = smul.addr %s363, 4
          %s365 = scalar_lea.hbm %s5, %s364
          %s367 = sshll.u32 %s357, 4
          %s368 = int_to_ptr.vmem [resolvable:$true] %s367
          %s369 = sshll.u32 %s365, 4
          %s370 = int_to_ptr.hbm [resolvable:$true] %s369
          %372 = dma.vmem_to_hbm [thread:$0]  %s368, 128, %s370, %s354
        $region48: #{tpu_custom_call.1} parent=39 // pred_fallthru
          _
      $region40: #{tpu_custom_call.1} parent=5 // pred_fallthru
        _
      %p373 = scmp.le.s32.totalorder 2, %s17
      // Predicated region
      $region49: #{tpu_custom_call.1} parent=5 // pred_check
        %p374 = pneg %p373
      $region50: #{tpu_custom_call.1} parent=5 // pred_check_branch
        %376 = sbr.rel (%p374) target = $region52
      $region51: #{tpu_custom_call.1} parent=5 // pred_region
        %s377 = ssub.s32 %s17, 2
        // Predicated region
        $region53: #{tpu_custom_call.1} parent=51 // pred_check
          %p378 = pneg %p156
        $region54: #{tpu_custom_call.1} parent=51 // pred_check_branch
          %380 = sbr.rel (%p378) target = $region56
        $region55: #{tpu_custom_call.1} parent=51 // pred_region
          %s381 = sand.u32 %s141, 1
          %s382 = scalar_lea.sflag [#allocation4], %s381
          %s383 = sand.u32 %s141, 1
          %s384 = smul.addr %s383, 8
          %s385 = scalar_lea.vmem [#allocation5], %s384
          %387 = dma.done %s382, 128
        $region56: #{tpu_custom_call.1} parent=51 // pred_fallthru
          _
      $region52: #{tpu_custom_call.1} parent=5 // pred_fallthru
        _
    $region6: #{tpu_custom_call.1} parent=1 // loop_footer
      %s21 = sadd.s32 1, %s17
    $region7: #{tpu_custom_call.1} parent=1 // loop_footer_branch
      %16 = sbr.rel target = $region3
    $region8: #{tpu_custom_call.1} parent=1 // loop_exit
      _
    %388 = vsyncpa [#allocation3], 1
    %s389 = scalar_lea.sflag [#allocation3], 1
    %390 = vsyncpa %s389, 1
    %391 = vsyncpa [#allocation4], 1
    %s392 = scalar_lea.sflag [#allocation4], 1
    %393 = vsyncpa %s392, 1

</llo_original>
